<compile_context>
chip_gen: v5e
topology: v5e:2x2
jax: 0.10.0
libtpu: 0.0.40
codegen_flags: <defaults>
</compile_context>

<pallas_src>
import jax
import jax.numpy as jnp
import numpy as np
from jax.experimental import pallas as pl
from jax.experimental.pallas import tpu as pltpu


def _inferential_kernel(ha_ref, hb_ref, wt_ref, p_ref, wa_ref, wb_ref, wc_ref,
                        bb_ref, g_ref, beta_ref, out_ref):
    B, TS, H = ha_ref.shape
    N = B * TS

    # Fold (B, TS) -> N rows for the matmuls (free sublane-only shape cast when
    # TS % 8 == 0, which the wrapper guarantees for multi-step grids).
    ha = ha_ref[...].astype(jnp.float32).reshape(N, H)
    hb = hb_ref[...].astype(jnp.float32).reshape(N, H)

    # t = tanh(W(ha * hb))  --  a single [N, H] @ [H, K] MXU matmul.
    x = ha * hb
    t = jnp.tanh(jnp.dot(x, wt_ref[...],
                         preferred_element_type=jnp.float32))          # [N, K]

    # logits = P(t) has output width 1 -> VPU multiply + lane reduce, not MXU.
    logits = jnp.sum(t * p_ref[...], axis=-1, keepdims=True)           # [N, 1]

    # Softmax over the BATCH axis (PyTorch implicit dim=0 for a 3-D tensor).
    # B is fully resident in every tile by construction -- do not tile B.
    lg = logits.reshape(B, TS, 1)
    m = jnp.max(lg, axis=0, keepdims=True)
    ex = jnp.exp(lg - m)
    denom = jnp.sum(ex, axis=0, keepdims=True)
    e = (ex / denom).reshape(N, 1)                                     # exact divide

    hb_d = ha * e                                                      # [N, H]

    # Folded Wb (concat eliminated in the wrapper):
    #   y = hb@(W1+W3) + hb_d@(W2-W3) + (x*e)@W4        with x = ha*hb
    y = (jnp.dot(hb,   wa_ref[...], preferred_element_type=jnp.float32)
         + jnp.dot(hb_d, wb_ref[...], preferred_element_type=jnp.float32)
         + jnp.dot(x * e, wc_ref[...], preferred_element_type=jnp.float32))
    y = jnp.maximum(y + bb_ref[...], 0.0)                              # bias + ReLU

    # LayerNorm over H (eps = 1e-5, affine).
    mu = jnp.mean(y, axis=-1, keepdims=True)
    var = jnp.mean(jnp.square(y - mu), axis=-1, keepdims=True)
    yn = (y - mu) * jax.lax.rsqrt(var + 1e-5)
    out = yn * g_ref[...] + beta_ref[...]
    out_ref[...] = out.reshape(B, TS, H).astype(out_ref.dtype)


def _pick_seq_block(B, S, H, itemsize):
    """Pick a sequence tile from a VMEM byte budget (v7x-safe)."""
    # Per-sequence-row VMEM cost: ha/hb/out tiles double-buffered by the
    # BlockSpec pipeline, plus ~8 f32 [B, H]-wide temporaries materialized in
    # the body (x, t, e, hb_d, y, yn, ...).
    io_bytes_per_row = 3 * 2 * B * H * itemsize
    tmp_bytes_per_row = 8 * B * H * 4
    row_bytes = io_bytes_per_row + tmp_bytes_per_row
    # Conservative budget with headroom under v7x's 32 MiB scoped-VMEM default
    # (64 MiB physical).  v5e/v6e could go higher, but tiles >=1024 rows are
    # already at >85% of HBM roofline, so there is little left to gain.
    budget = 20 * 1024 * 1024
    max_ts = min(max(8, budget // row_bytes), 4096)
    if S <= max_ts:
        return S  # whole problem in one grid step: no pipeline/step overhead
    best = None
    t = 8
    while t <= max_ts:
        if S % t == 0:
            best = t
        t += 8
    if best is None:
        # No sublane-aligned divisor of S fits the budget: fall back to a single
        # full-extent step (always layout-legal; correctness over peak perf).
        return S
    return best


def inferential_module(ha, hb, params, *, seq_block=None):
    B, S, H = ha.shape

    if seq_block is None:
        seq_block = _pick_seq_block(B, S, H, ha.dtype.itemsize)
    TS = seq_block
    assert S % TS == 0, "seq_block must divide S"
    assert TS % 8 == 0 or TS == S, "seq tile must be a multiple of 8 or the full S"

    # Pre-transpose W once (PyTorch Linear stores (out, in)).
    wt = params['W'].T                       # [H, K]
    # Fold Wb so the kernel never builds the [N, 4H] concat:
    #   cat@Wb.T = hb@W1 + hb_d@W2 + (hb-hb_d)@W3 + (hb*hb_d)@W4
    #            = hb@(W1+W3) + hb_d@(W2-W3) + (x*e)@W4,  x = ha*hb, hb_d = ha*e
    wbt = params['Wb'].T                     # [4H, H]
    w1, w2, w3, w4 = wbt[0:H], wbt[H:2 * H], wbt[2 * H:3 * H], wbt[3 * H:4 * H]
    wa = w1 + w3                             # [H, H]
    wb = w2 - w3                             # [H, H]
    wc = w4                                  # [H, H]

    # NOTE: the softmax is over the batch axis, so B must NEVER be tiled,
    # megacore-split, or sharded.  Only the sequence axis is gridded; each tile
    # is independent across S (softmax is per (s, k) position over batch), so
    # "parallel" is safe for cross-TensorCore splitting when there are >=2
    # substantial steps.
    grid = (S // TS,)
    act_spec = pl.BlockSpec((B, TS, H), lambda s: (0, s, 0))

    def whole(arr):
        n = arr.ndim
        return pl.BlockSpec(arr.shape, lambda s, _n=n: (0,) * _n)

    return pl.pallas_call(
        _inferential_kernel,
        out_shape=jax.ShapeDtypeStruct((B, S, H), ha.dtype),
        grid=grid,
        in_specs=[act_spec, act_spec,
                  whole(wt), whole(params['P']),
                  whole(wa), whole(wb), whole(wc),
                  whole(params['bb']), whole(params['gamma']),
                  whole(params['beta'])],
        out_specs=act_spec,
        compiler_params=pltpu.CompilerParams(
            dimension_semantics=("parallel",),
            vmem_limit_bytes=32 * 1024 * 1024),
    )(ha, hb, wt, params['P'], wa, wb, wc,
      params['bb'], params['gamma'], params['beta'])


def reference(ha, hb, params):
    """Pure-JAX reference mirroring the PyTorch forward exactly."""
    x = ha * hb
    t = jnp.tanh(x @ params['W'].T)                       # [B, S, K]
    logits = t @ params['P'].T                            # [B, S, 1]
    e = jax.nn.softmax(logits, axis=0)                    # implicit dim=0 for 3-D
    hb_d = ha * e
    hb_dd = jnp.concatenate([hb, hb_d, hb - hb_d, hb * hb_d], axis=2)
    y = jax.nn.relu(hb_dd @ params['Wb'].T + params['bb'][0])
    mu = y.mean(-1, keepdims=True)
    var = ((y - mu) ** 2).mean(-1, keepdims=True)
    return (y - mu) / jnp.sqrt(var + 1e-5) * params['gamma'][0] + params['beta'][0]


if __name__ == "__main__":
    B, S, H, K = 2, 16, 32, 16   # conf.hidden_size = 32, conf.k = 16

    key = jax.random.PRNGKey(0)
    k_ha, k_hb, k_w, k_p, k_wb, k_bb, k_g, k_be = jax.random.split(key, 8)

    ha = jax.random.normal(k_ha, (B, S, H), dtype=jnp.float32)
    hb = jax.random.normal(k_hb, (B, S, H), dtype=jnp.float32)

    params = {
        # PyTorch nn.Linear weight layout: (out_features, in_features)
        'W':     0.1 * jax.random.normal(k_w,  (K, H),     dtype=jnp.float32),
        'P':     0.1 * jax.random.normal(k_p,  (1, K),     dtype=jnp.float32),
        'Wb':    0.1 * jax.random.normal(k_wb, (H, 4 * H), dtype=jnp.float32),
        'bb':    0.1 * jax.random.normal(k_bb, (1, H),     dtype=jnp.float32),
        # LayerNorm affine params (default init is ones/zeros; perturb a bit)
        'gamma': 1.0 + 0.05 * jax.random.normal(k_g,  (1, H), dtype=jnp.float32),
        'beta':        0.05 * jax.random.normal(k_be, (1, H), dtype=jnp.float32),
    }

    out = inferential_module(ha, hb, params)
    out = jax.block_until_ready(out)

    ref = reference(ha, hb, params)
    # Exact softmax division now matches the f32 reference closely; remaining
    # deltas are f32 matmul rounding (folded vs. concatenated Wb contraction).
    np.testing.assert_allclose(np.asarray(out), np.asarray(ref),
                               rtol=1e-4, atol=1e-4)
    print("KERNEL_OK")
</pallas_src>

<mosaic_0001>
module attributes {stable_mosaic.version = 11 : i64} {
  func.func @_inferential_kernel(%arg0: i32, %arg1: memref<2x16x32xf32, #tpu.memory_space<vmem>>, %arg2: memref<2x16x32xf32, #tpu.memory_space<vmem>>, %arg3: memref<32x16xf32, #tpu.memory_space<vmem>>, %arg4: memref<1x16xf32, #tpu.memory_space<vmem>>, %arg5: memref<32x32xf32, #tpu.memory_space<vmem>>, %arg6: memref<32x32xf32, #tpu.memory_space<vmem>>, %arg7: memref<32x32xf32, #tpu.memory_space<vmem>>, %arg8: memref<1x32xf32, #tpu.memory_space<vmem>>, %arg9: memref<1x32xf32, #tpu.memory_space<vmem>>, %arg10: memref<1x32xf32, #tpu.memory_space<vmem>>, %arg11: memref<2x16x32xf32, #tpu.memory_space<vmem>>) attributes {dimension_semantics = [#tpu.dimension_semantics<parallel>], iteration_bounds = array<i64: 1>, scalar_prefetch = 0 : i64, scratch_operands = 0 : i64, tpu.core_type = #tpu.core_type<tc>, window_params = [{transform_indices = @transform_0, window_bounds = array<i64: 2, 16, 32>}, {transform_indices = @transform_1, window_bounds = array<i64: 2, 16, 32>}, {pipeline_mode = #tpu.pipeline_mode<synchronous>, transform_indices = @transform_2, window_bounds = array<i64: 32, 16>}, {pipeline_mode = #tpu.pipeline_mode<synchronous>, transform_indices = @transform_3, window_bounds = array<i64: 1, 16>}, {pipeline_mode = #tpu.pipeline_mode<synchronous>, transform_indices = @transform_4, window_bounds = array<i64: 32, 32>}, {pipeline_mode = #tpu.pipeline_mode<synchronous>, transform_indices = @transform_5, window_bounds = array<i64: 32, 32>}, {pipeline_mode = #tpu.pipeline_mode<synchronous>, transform_indices = @transform_6, window_bounds = array<i64: 32, 32>}, {pipeline_mode = #tpu.pipeline_mode<synchronous>, transform_indices = @transform_7, window_bounds = array<i64: 1, 32>}, {pipeline_mode = #tpu.pipeline_mode<synchronous>, transform_indices = @transform_8, window_bounds = array<i64: 1, 32>}, {pipeline_mode = #tpu.pipeline_mode<synchronous>, transform_indices = @transform_9, window_bounds = array<i64: 1, 32>}, {transform_indices = @transform_10, window_bounds = array<i64: 2, 16, 32>}]} {
    %c0 = arith.constant 0 : index
    %c0_0 = arith.constant 0 : index
    %c0_1 = arith.constant 0 : index
    %0 = vector.load %arg1[%c0, %c0_0, %c0_1] : memref<2x16x32xf32, #tpu.memory_space<vmem>>, vector<2x16x32xf32>
    %1 = vector.shape_cast %0 : vector<2x16x32xf32> to vector<32x32xf32>
    %c0_2 = arith.constant 0 : index
    %c0_3 = arith.constant 0 : index
    %c0_4 = arith.constant 0 : index
    %2 = vector.load %arg2[%c0_2, %c0_3, %c0_4] : memref<2x16x32xf32, #tpu.memory_space<vmem>>, vector<2x16x32xf32>
    %3 = vector.shape_cast %2 : vector<2x16x32xf32> to vector<32x32xf32>
    %4 = arith.mulf %1, %3 : vector<32x32xf32>
    %c0_5 = arith.constant 0 : index
    %c0_6 = arith.constant 0 : index
    %5 = vector.load %arg3[%c0_5, %c0_6] : memref<32x16xf32, #tpu.memory_space<vmem>>, vector<32x16xf32>
    %cst = arith.constant dense<0.000000e+00> : vector<32x16xf32>
    %6 = tpu.matmul %4, %5, %cst {dimension_numbers = #tpu.dot_dimension_numbers<[1], [0], [0], [1], [0, 0, 1, 1], [], []>} : vector<32x32xf32>, vector<32x16xf32>, vector<32x16xf32> -> vector<32x16xf32>
    %7 = math.tanh %6 : vector<32x16xf32>
    %c0_7 = arith.constant 0 : index
    %c0_8 = arith.constant 0 : index
    %8 = vector.load %arg4[%c0_7, %c0_8] : memref<1x16xf32, #tpu.memory_space<vmem>>, vector<1x16xf32>
    %9 = vector.broadcast %8 : vector<1x16xf32> to vector<32x16xf32>
    %10 = arith.mulf %7, %9 : vector<32x16xf32>
    %cst_9 = arith.constant dense<0.000000e+00> : vector<32xf32>
    %11 = vector.multi_reduction <add>, %10, %cst_9 [1] : vector<32x16xf32> to vector<32xf32>
    %12 = vector.shape_cast %11 : vector<32xf32> to vector<32x1xf32>
    %13 = vector.shape_cast %12 : vector<32x1xf32> to vector<2x16x1xf32>
    %cst_10 = arith.constant dense<0xFF800000> : vector<16x1xf32>
    %14 = vector.multi_reduction <maximumf>, %13, %cst_10 [0] : vector<2x16x1xf32> to vector<16x1xf32>
    %15 = vector.shape_cast %14 : vector<16x1xf32> to vector<1x16x1xf32>
    %16 = vector.broadcast %15 : vector<1x16x1xf32> to vector<2x16x1xf32>
    %17 = arith.subf %13, %16 : vector<2x16x1xf32>
    %18 = math.exp %17 : vector<2x16x1xf32>
    %cst_11 = arith.constant dense<0.000000e+00> : vector<16x1xf32>
    %19 = vector.multi_reduction <add>, %18, %cst_11 [0] : vector<2x16x1xf32> to vector<16x1xf32>
    %20 = vector.shape_cast %19 : vector<16x1xf32> to vector<1x16x1xf32>
    %21 = vector.broadcast %20 : vector<1x16x1xf32> to vector<2x16x1xf32>
    %22 = arith.divf %18, %21 : vector<2x16x1xf32>
    %23 = vector.shape_cast %22 : vector<2x16x1xf32> to vector<32x1xf32>
    %24 = vector.broadcast %23 : vector<32x1xf32> to vector<32x32xf32>
    %25 = arith.mulf %1, %24 : vector<32x32xf32>
    %c0_12 = arith.constant 0 : index
    %c0_13 = arith.constant 0 : index
    %26 = vector.load %arg5[%c0_12, %c0_13] : memref<32x32xf32, #tpu.memory_space<vmem>>, vector<32x32xf32>
    %cst_14 = arith.constant dense<0.000000e+00> : vector<32x32xf32>
    %27 = tpu.matmul %3, %26, %cst_14 {dimension_numbers = #tpu.dot_dimension_numbers<[1], [0], [0], [1], [0, 0, 1, 1], [], []>} : vector<32x32xf32>, vector<32x32xf32>, vector<32x32xf32> -> vector<32x32xf32>
    %c0_15 = arith.constant 0 : index
    %c0_16 = arith.constant 0 : index
    %28 = vector.load %arg6[%c0_15, %c0_16] : memref<32x32xf32, #tpu.memory_space<vmem>>, vector<32x32xf32>
    %cst_17 = arith.constant dense<0.000000e+00> : vector<32x32xf32>
    %29 = tpu.matmul %25, %28, %cst_17 {dimension_numbers = #tpu.dot_dimension_numbers<[1], [0], [0], [1], [0, 0, 1, 1], [], []>} : vector<32x32xf32>, vector<32x32xf32>, vector<32x32xf32> -> vector<32x32xf32>
    %30 = arith.addf %27, %29 : vector<32x32xf32>
    %31 = vector.broadcast %23 : vector<32x1xf32> to vector<32x32xf32>
    %32 = arith.mulf %4, %31 : vector<32x32xf32>
    %c0_18 = arith.constant 0 : index
    %c0_19 = arith.constant 0 : index
    %33 = vector.load %arg7[%c0_18, %c0_19] : memref<32x32xf32, #tpu.memory_space<vmem>>, vector<32x32xf32>
    %cst_20 = arith.constant dense<0.000000e+00> : vector<32x32xf32>
    %34 = tpu.matmul %32, %33, %cst_20 {dimension_numbers = #tpu.dot_dimension_numbers<[1], [0], [0], [1], [0, 0, 1, 1], [], []>} : vector<32x32xf32>, vector<32x32xf32>, vector<32x32xf32> -> vector<32x32xf32>
    %35 = arith.addf %30, %34 : vector<32x32xf32>
    %c0_21 = arith.constant 0 : index
    %c0_22 = arith.constant 0 : index
    %36 = vector.load %arg8[%c0_21, %c0_22] : memref<1x32xf32, #tpu.memory_space<vmem>>, vector<1x32xf32>
    %37 = vector.broadcast %36 : vector<1x32xf32> to vector<32x32xf32>
    %38 = arith.addf %35, %37 : vector<32x32xf32>
    %cst_23 = arith.constant 0.000000e+00 : f32
    %39 = vector.broadcast %cst_23 : f32 to vector<32x32xf32>
    %40 = arith.maximumf %38, %39 : vector<32x32xf32>
    %cst_24 = arith.constant dense<0.000000e+00> : vector<32xf32>
    %41 = vector.multi_reduction <add>, %40, %cst_24 [1] : vector<32x32xf32> to vector<32xf32>
    %42 = vector.shape_cast %41 : vector<32xf32> to vector<32x1xf32>
    %cst_25 = arith.constant 3.200000e+01 : f32
    %43 = vector.broadcast %cst_25 : f32 to vector<32x1xf32>
    %44 = arith.divf %42, %43 : vector<32x1xf32>
    %45 = vector.broadcast %44 : vector<32x1xf32> to vector<32x32xf32>
    %46 = arith.subf %40, %45 : vector<32x32xf32>
    %47 = arith.mulf %46, %46 : vector<32x32xf32>
    %cst_26 = arith.constant dense<0.000000e+00> : vector<32xf32>
    %48 = vector.multi_reduction <add>, %47, %cst_26 [1] : vector<32x32xf32> to vector<32xf32>
    %49 = vector.shape_cast %48 : vector<32xf32> to vector<32x1xf32>
    %cst_27 = arith.constant 3.200000e+01 : f32
    %50 = vector.broadcast %cst_27 : f32 to vector<32x1xf32>
    %51 = arith.divf %49, %50 : vector<32x1xf32>
    %52 = vector.broadcast %44 : vector<32x1xf32> to vector<32x32xf32>
    %53 = arith.subf %40, %52 : vector<32x32xf32>
    %cst_28 = arith.constant 9.99999974E-6 : f32
    %54 = vector.broadcast %cst_28 : f32 to vector<32x1xf32>
    %55 = arith.addf %51, %54 : vector<32x1xf32>
    %56 = math.rsqrt %55 : vector<32x1xf32>
    %57 = vector.broadcast %56 : vector<32x1xf32> to vector<32x32xf32>
    %58 = arith.mulf %53, %57 : vector<32x32xf32>
    %c0_29 = arith.constant 0 : index
    %c0_30 = arith.constant 0 : index
    %59 = vector.load %arg9[%c0_29, %c0_30] : memref<1x32xf32, #tpu.memory_space<vmem>>, vector<1x32xf32>
    %60 = vector.broadcast %59 : vector<1x32xf32> to vector<32x32xf32>
    %61 = arith.mulf %58, %60 : vector<32x32xf32>
    %c0_31 = arith.constant 0 : index
    %c0_32 = arith.constant 0 : index
    %62 = vector.load %arg10[%c0_31, %c0_32] : memref<1x32xf32, #tpu.memory_space<vmem>>, vector<1x32xf32>
    %63 = vector.broadcast %62 : vector<1x32xf32> to vector<32x32xf32>
    %64 = arith.addf %61, %63 : vector<32x32xf32>
    %65 = vector.shape_cast %64 : vector<32x32xf32> to vector<2x16x32xf32>
    %c0_33 = arith.constant 0 : index
    %c0_34 = arith.constant 0 : index
    %c0_35 = arith.constant 0 : index
    %66 = vector.load %arg11[%c0_33, %c0_34, %c0_35] : memref<2x16x32xf32, #tpu.memory_space<vmem>>, vector<2x16x32xf32>
    tpu.vector_store %arg11[%c0_33, %c0_34, %c0_35], %65 {strides = array<i32>} : memref<2x16x32xf32, #tpu.memory_space<vmem>>, vector<2x16x32xf32>,
    return
  }
  func.func @transform_0(%arg0: i32) -> (i32, i32, i32) {
    %c0_i32 = arith.constant 0 : i32
    %c0_i32_0 = arith.constant 0 : i32
    %c0_i32_1 = arith.constant 0 : i32
    return %c0_i32, %arg0, %c0_i32_0 : i32, i32, i32
  }
  func.func @transform_1(%arg0: i32) -> (i32, i32, i32) {
    %c0_i32 = arith.constant 0 : i32
    %c0_i32_0 = arith.constant 0 : i32
    %c0_i32_1 = arith.constant 0 : i32
    return %c0_i32, %arg0, %c0_i32_0 : i32, i32, i32
  }
  func.func @transform_2(%arg0: i32) -> (i32, i32) {
    %c0_i32 = arith.constant 0 : i32
    %c0_i32_0 = arith.constant 0 : i32
    %c0_i32_1 = arith.constant 0 : i32
    return %c0_i32, %c0_i32_0 : i32, i32
  }
  func.func @transform_3(%arg0: i32) -> (i32, i32) {
    %c0_i32 = arith.constant 0 : i32
    %c0_i32_0 = arith.constant 0 : i32
    %c0_i32_1 = arith.constant 0 : i32
    return %c0_i32, %c0_i32_0 : i32, i32
  }
  func.func @transform_4(%arg0: i32) -> (i32, i32) {
    %c0_i32 = arith.constant 0 : i32
    %c0_i32_0 = arith.constant 0 : i32
    %c0_i32_1 = arith.constant 0 : i32
    return %c0_i32, %c0_i32_0 : i32, i32
  }
  func.func @transform_5(%arg0: i32) -> (i32, i32) {
    %c0_i32 = arith.constant 0 : i32
    %c0_i32_0 = arith.constant 0 : i32
    %c0_i32_1 = arith.constant 0 : i32
    return %c0_i32, %c0_i32_0 : i32, i32
  }
  func.func @transform_6(%arg0: i32) -> (i32, i32) {
    %c0_i32 = arith.constant 0 : i32
    %c0_i32_0 = arith.constant 0 : i32
    %c0_i32_1 = arith.constant 0 : i32
    return %c0_i32, %c0_i32_0 : i32, i32
  }
  func.func @transform_7(%arg0: i32) -> (i32, i32) {
    %c0_i32 = arith.constant 0 : i32
    %c0_i32_0 = arith.constant 0 : i32
    %c0_i32_1 = arith.constant 0 : i32
    return %c0_i32, %c0_i32_0 : i32, i32
  }
  func.func @transform_8(%arg0: i32) -> (i32, i32) {
    %c0_i32 = arith.constant 0 : i32
    %c0_i32_0 = arith.constant 0 : i32
    %c0_i32_1 = arith.constant 0 : i32
    return %c0_i32, %c0_i32_0 : i32, i32
  }
  func.func @transform_9(%arg0: i32) -> (i32, i32) {
    %c0_i32 = arith.constant 0 : i32
    %c0_i32_0 = arith.constant 0 : i32
    %c0_i32_1 = arith.constant 0 : i32
    return %c0_i32, %c0_i32_0 : i32, i32
  }
  func.func @transform_10(%arg0: i32) -> (i32, i32, i32) {
    %c0_i32 = arith.constant 0 : i32
    %c0_i32_0 = arith.constant 0 : i32
    %c0_i32_1 = arith.constant 0 : i32
    return %c0_i32, %arg0, %c0_i32_0 : i32, i32, i32
  }
}

</mosaic_0001>

<llo_original>
// kernel: tpu_custom_call.1
$region0: #{tpu_custom_call.1}
  #allocation0 [shape = 'u32[]', space=smem, size = 0x4, offset = 0x4, fixed_abs, tag = 'smem constant byte address 0x4 - core index']
  #allocation1 [shape = 'u32[72,128]{1,0:T(1,128)}', space=vmem, size = 0x9000, scoped, tag = 'internal scratch']
  %s0 = inlined_call_operand.vmem [shape: f32[2,16,32], index: 0, kind: input, shape index: {}]
  %s1 = inlined_call_operand.hbm [shape: f32[2,16,32], index: 1, kind: input, shape index: {}]
  %s2 = inlined_call_operand.vmem [shape: f32[32,16], index: 2, kind: input, shape index: {}]
  %s3 = inlined_call_operand.vmem [shape: f32[1,16], index: 3, kind: input, shape index: {}]
  %s4 = inlined_call_operand.hbm [shape: f32[32,32], index: 4, kind: input, shape index: {}]
  %s5 = inlined_call_operand.hbm [shape: f32[32,32], index: 5, kind: input, shape index: {}]
  %s6 = inlined_call_operand.hbm [shape: f32[32,32], index: 6, kind: input, shape index: {}]
  %s7 = inlined_call_operand.vmem [shape: f32[1,32], index: 7, kind: input, shape index: {}]
  %s8 = inlined_call_operand.vmem [shape: f32[1,32], index: 8, kind: input, shape index: {}]
  %s9 = inlined_call_operand.vmem [shape: f32[1,32], index: 9, kind: input, shape index: {}]
  %s10 = inlined_call_operand.hbm [shape: f32[2,16,32], index: 10, kind: output, shape index: {}]
  %s11 = sld [smem:[#allocation0]]
  $region66: #{tpu_custom_call.1} parent=0
    _
  %s13 = ssub.s32 1, %s11
  %s14 = scalar_select 0, %s13, %s11
  $region1: #{tpu_custom_call.1} parent=0
    #allocation2 [shape = 'u8[16384]{0}', space=vmem, size = 0x4000, scoped, tag = 'input window, operand 1, single buffered']
    #allocation3 [shape = 's32[1]{0}', space=sflag, size = 0x4, scoped, tag = 'scoped memory for tpu_custom_call.1']
    #allocation4 [shape = 's32[1]{0}', space=sflag, size = 0x4, scoped, tag = 'scoped memory for tpu_custom_call.1']
    #allocation5 [shape = 'u8[16384]{0}', space=vmem, size = 0x4000, scoped, tag = 'input window, operand 4, single buffered']
    #allocation6 [shape = 's32[1]{0}', space=sflag, size = 0x4, scoped, tag = 'scoped memory for tpu_custom_call.1']
    #allocation7 [shape = 'u8[16384]{0}', space=vmem, size = 0x4000, scoped, tag = 'input window, operand 5, single buffered']
    #allocation8 [shape = 'u8[16384]{0}', space=vmem, size = 0x4000, scoped, tag = 'input window, operand 6, single buffered']
    #allocation9 [shape = 's32[1]{0}', space=sflag, size = 0x4, scoped, tag = 'scoped memory for tpu_custom_call.1']
    #allocation10 [shape = 'u8[16384]{0}', space=vmem, size = 0x4000, scoped, tag = 'output window, operand 0, single buffered']
    %15 = vsyncpa [#allocation3], 0
    %16 = vsyncpa [#allocation6], 0
    %17 = vsyncpa [#allocation9], 0
    %18 = vsyncpa [#allocation4], 0
    // Predicated region
    $region2: #{tpu_custom_call.1} parent=1 // pred_check
      _
    $region3: #{tpu_custom_call.1} parent=1 // pred_check_branch
      %20 = sbr.rel (0) target = $region5
    $region4: #{tpu_custom_call.1} parent=1 // pred_region
      _
    $region5: #{tpu_custom_call.1} parent=1 // pred_fallthru
      _
    // Predicated region
    $region6: #{tpu_custom_call.1} parent=1 // pred_check
      _
    $region7: #{tpu_custom_call.1} parent=1 // pred_check_branch
      %22 = sbr.rel (0) target = $region9
    $region8: #{tpu_custom_call.1} parent=1 // pred_region
      %24 = vsyncadd [#allocation3], 0
      %s25 = sshll.u32 %s1, 4
      %s26 = int_to_ptr.hbm [resolvable:$true] %s25
      %s27 = sshll.u32 [#allocation2], 4
      %s28 = int_to_ptr.vmem [resolvable:$true] %s27
      %33 = dma.hbm_to_vmem [thread:$0]  %s26, 512, %s28, [#allocation3], 128, 128, 8
    $region9: #{tpu_custom_call.1} parent=1 // pred_fallthru
      _
    // Predicated region
    $region10: #{tpu_custom_call.1} parent=1 // pred_check
      _
    $region11: #{tpu_custom_call.1} parent=1 // pred_check_branch
      %35 = sbr.rel (0) target = $region13
    $region12: #{tpu_custom_call.1} parent=1 // pred_region
      _
    $region13: #{tpu_custom_call.1} parent=1 // pred_fallthru
      _
    // Predicated region
    $region14: #{tpu_custom_call.1} parent=1 // pred_check
      _
    $region15: #{tpu_custom_call.1} parent=1 // pred_check_branch
      %37 = sbr.rel (0) target = $region17
    $region16: #{tpu_custom_call.1} parent=1 // pred_region
      _
    $region17: #{tpu_custom_call.1} parent=1 // pred_fallthru
      _
    // Predicated region
    $region18: #{tpu_custom_call.1} parent=1 // pred_check
      _
    $region19: #{tpu_custom_call.1} parent=1 // pred_check_branch
      %39 = sbr.rel (0) target = $region21
    $region20: #{tpu_custom_call.1} parent=1 // pred_region
      %41 = vsyncadd [#allocation6], 0
      %s42 = sshll.u32 %s4, 4
      %s43 = int_to_ptr.hbm [resolvable:$true] %s42
      %s44 = sshll.u32 [#allocation5], 4
      %s45 = int_to_ptr.vmem [resolvable:$true] %s44
      %50 = dma.hbm_to_vmem [thread:$0]  %s43, 512, %s45, [#allocation6], 128, 128, 8
    $region21: #{tpu_custom_call.1} parent=1 // pred_fallthru
      _
    // Predicated region
    $region22: #{tpu_custom_call.1} parent=1 // pred_check
      _
    $region23: #{tpu_custom_call.1} parent=1 // pred_check_branch
      %52 = sbr.rel (0) target = $region25
    $region24: #{tpu_custom_call.1} parent=1 // pred_region
      %54 = vsyncadd [#allocation6], 0
      %s55 = sshll.u32 %s5, 4
      %s56 = int_to_ptr.hbm [resolvable:$true] %s55
      %s57 = sshll.u32 [#allocation7], 4
      %s58 = int_to_ptr.vmem [resolvable:$true] %s57
      %63 = dma.hbm_to_vmem [thread:$0]  %s56, 512, %s58, [#allocation6], 128, 128, 8
    $region25: #{tpu_custom_call.1} parent=1 // pred_fallthru
      _
    // Predicated region
    $region26: #{tpu_custom_call.1} parent=1 // pred_check
      _
    $region27: #{tpu_custom_call.1} parent=1 // pred_check_branch
      %65 = sbr.rel (0) target = $region29
    $region28: #{tpu_custom_call.1} parent=1 // pred_region
      %67 = vsyncadd [#allocation9], 0
      %s68 = sshll.u32 %s6, 4
      %s69 = int_to_ptr.hbm [resolvable:$true] %s68
      %s70 = sshll.u32 [#allocation8], 4
      %s71 = int_to_ptr.vmem [resolvable:$true] %s70
      %76 = dma.hbm_to_vmem [thread:$0]  %s69, 512, %s71, [#allocation9], 128, 128, 8
    $region29: #{tpu_custom_call.1} parent=1 // pred_fallthru
      _
    // Predicated region
    $region30: #{tpu_custom_call.1} parent=1 // pred_check
      _
    $region31: #{tpu_custom_call.1} parent=1 // pred_check_branch
      %78 = sbr.rel (0) target = $region33
    $region32: #{tpu_custom_call.1} parent=1 // pred_region
      _
    $region33: #{tpu_custom_call.1} parent=1 // pred_fallthru
      _
    // Predicated region
    $region34: #{tpu_custom_call.1} parent=1 // pred_check
      _
    $region35: #{tpu_custom_call.1} parent=1 // pred_check_branch
      %80 = sbr.rel (0) target = $region37
    $region36: #{tpu_custom_call.1} parent=1 // pred_region
      _
    $region37: #{tpu_custom_call.1} parent=1 // pred_fallthru
      _
    // Predicated region
    $region38: #{tpu_custom_call.1} parent=1 // pred_check
      _
    $region39: #{tpu_custom_call.1} parent=1 // pred_check_branch
      %82 = sbr.rel (0) target = $region41
    $region40: #{tpu_custom_call.1} parent=1 // pred_region
      _
    $region41: #{tpu_custom_call.1} parent=1 // pred_fallthru
      _
    // Predicated region
    $region42: #{tpu_custom_call.1} parent=1 // pred_check
      _
    $region43: #{tpu_custom_call.1} parent=1 // pred_check_branch
      %84 = sbr.rel (0) target = $region45
    $region44: #{tpu_custom_call.1} parent=1 // pred_region
      %86 = dma.done [#allocation3], 512
    $region45: #{tpu_custom_call.1} parent=1 // pred_fallthru
      _
    // Predicated region
    $region46: #{tpu_custom_call.1} parent=1 // pred_check
      _
    $region47: #{tpu_custom_call.1} parent=1 // pred_check_branch
      %88 = sbr.rel (0) target = $region49
    $region48: #{tpu_custom_call.1} parent=1 // pred_region
      %90 = dma.done [#allocation6], 512
    $region49: #{tpu_custom_call.1} parent=1 // pred_fallthru
      _
    // Predicated region
    $region50: #{tpu_custom_call.1} parent=1 // pred_check
      _
    $region51: #{tpu_custom_call.1} parent=1 // pred_check_branch
      %92 = sbr.rel (0) target = $region53
    $region52: #{tpu_custom_call.1} parent=1 // pred_region
      %94 = dma.done [#allocation6], 512
    $region53: #{tpu_custom_call.1} parent=1 // pred_fallthru
      _
    // Predicated region
    $region54: #{tpu_custom_call.1} parent=1 // pred_check
      _
    $region55: #{tpu_custom_call.1} parent=1 // pred_check_branch
      %96 = sbr.rel (0) target = $region57
    $region56: #{tpu_custom_call.1} parent=1 // pred_region
      %98 = dma.done [#allocation9], 512
    $region57: #{tpu_custom_call.1} parent=1 // pred_fallthru
      _
    %v99 = vld [vmem:[%s0] sm:$0xff]
    %v100 = vld [vmem:[%s0 + $0x8] sm:$0xff]
    %v101 = vld [vmem:[%s0 + $0x10] sm:$0xff]
    %v102 = vld [vmem:[%s0 + $0x18] sm:$0xff]
    %v103 = vld [vmem:[#allocation2] sm:$0xff]
    %v104 = vld [vmem:[#allocation2 + $0x8] sm:$0xff]
    %v105 = vld [vmem:[#allocation2 + $0x10] sm:$0xff]
    %v106 = vld [vmem:[#allocation2 + $0x18] sm:$0xff]
    %v107 = vmul.f32 %v99, %v103
    %v108 = vmul.f32 %v100, %v104
    %v109 = vmul.f32 %v101, %v105
    %v110 = vmul.f32 %v102, %v106
    %v111 = vld [vmem:[%s2] sm:$0xff]
    %v112 = vld [vmem:[%s2 + $0x8] sm:$0xff]
    %v113 = vld [vmem:[%s2 + $0x10] sm:$0xff]
    %v114 = vld [vmem:[%s2 + $0x18] sm:$0xff]
    %vm115 = vcmask 261120
    %v117 = vsel %vm115, %v107, 0
    %v120 = vsel %vm115, %v108, 0
    %v123 = vsel %vm115, %v109, 0
    %v126 = vsel %vm115, %v110, 0
    %128 = vmatpush.msra.mxu0 0.0
    %129 = vmatpush.msra.mxu0 0.0
    %130 = vmatpush.msra.mxu0 0.0
    %131 = vmatpush.msra.mxu0 0.0
    %132 = vmatpush.msra.mxu0 0.0
    %133 = vmatpush.msra.mxu0 0.0
    %134 = vmatpush.msra.mxu0 0.0
    %135 = vmatpush.msra.mxu0 0.0
    %136 = vmatpush.msra.mxu0 0.0
    %137 = vmatpush.msra.mxu0 0.0
    %138 = vmatpush.msra.mxu0 0.0
    %139 = vmatpush.msra.mxu0 0.0
    %140 = vmatpush.msra.mxu0 %v114
    %141 = vmatpush.msra.mxu0 %v113
    %142 = vmatpush.msra.mxu0 %v112
    %143 = vmatpush.msra.mxu0 %v111
    %144 = vmatmul.f32.gmra.mxu0 %v117
    %v145 = vpop.f32.mrf.mxu0
    %v146 = vadd.f32 0.0, %v145
    %147 = vmatmul.f32.gmra.mxu0 %v120
    %v148 = vpop.f32.mrf.mxu0
    %v149 = vadd.f32 0.0, %v148
    %150 = vmatmul.f32.gmra.mxu0 %v123
    %v151 = vpop.f32.mrf.mxu0
    %v152 = vadd.f32 0.0, %v151
    %153 = vmatmul.f32.gmra.mxu0 %v126
    %v154 = vpop.f32.mrf.mxu0
    %v155 = vadd.f32 0.0, %v154
    %156 = vdwg.mxu0
    %v157 = vtanh.pop %v146
    %v158 = vtanh.pop %v149
    %v159 = vtanh.pop %v152
    %v160 = vtanh.pop %v155
    %v161 = vld [vmem:[%s3] sm:$0x1]
    %v163 = vperm.slane %v161, 0
    %v165 = vmul.f32 %v157, %v163
    %v166 = vmul.f32 %v158, %v163
    %v167 = vmul.f32 %v159, %v163
    %v168 = vmul.f32 %v160, %v163
    %vm169 = vcmask 130048
    %v170 = vsel %vm169, %v165, 0.0
    %171 = vadd.xlane.f32.xlu0 %v170
    %v172 = vpop.xlane.xlu0 %171
    %v173 = vsel %vm169, %v166, 0.0
    %174 = vadd.xlane.f32.xlu0 %v173
    %v175 = vpop.xlane.xlu0 %174
    %v176 = vsel %vm169, %v167, 0.0
    %177 = vadd.xlane.f32.xlu0 %v176
    %v178 = vpop.xlane.xlu0 %177
    %v179 = vsel %vm169, %v168, 0.0
    %180 = vadd.xlane.f32.xlu0 %v179
    %v181 = vpop.xlane.xlu0 %180
    %v182 = vmax.f32 %v172, %v178
    %v183 = vmax.f32 %v175, %v181
    %v184 = vsub.f32 %v172, %v182
    %v185 = vsub.f32 %v175, %v183
    %v186 = vsub.f32 %v178, %v182
    %v187 = vsub.f32 %v181, %v183
    %v188 = vmul.f32 %v184, 1.442695
    %v189 = vpow.pop %v188
    %v190 = vmul.f32 %v185, 1.442695
    %v191 = vpow.pop %v190
    %v192 = vmul.f32 %v186, 1.442695
    %v193 = vpow.pop %v192
    %v194 = vmul.f32 %v187, 1.442695
    %v195 = vpow.pop %v194
    %v196 = vadd.f32 %v189, %v193
    %v197 = vadd.f32 %v191, %v195
    %v198 = vrcp.pop %v196
    %v199 = vmul.f32 %v196, %v198
    %v200 = vsub.f32 1.0, %v199
    %v201 = vmul.f32 %v198, %v200
    %v202 = vadd.f32 %v198, %v201
    %vm203 = vweird.f32 %v196
    %vm204 = vweird.f32 %v198
    %vm205 = vmor %vm203, %vm204
    %v206 = vsel %vm205, %v198, %v202
    %v207 = vand.u32 2147483647, %v196
    %vm208 = vcmp.eq.f32.partialorder %v207, 8.507059e+37
    %v209 = vand.u32 %v196, 2147483648
    %v210 = vor.u32 1.1754944e-38, %v209
    %v211 = vsel %vm208, %v210, %v206
    %v212 = vmul.f32 %v189, %v211
    %v213 = vrcp.pop %v197
    %v214 = vmul.f32 %v197, %v213
    %v215 = vsub.f32 1.0, %v214
    %v216 = vmul.f32 %v213, %v215
    %v217 = vadd.f32 %v213, %v216
    %vm218 = vweird.f32 %v197
    %vm219 = vweird.f32 %v213
    %vm220 = vmor %vm218, %vm219
    %v221 = vsel %vm220, %v213, %v217
    %v222 = vand.u32 2147483647, %v197
    %vm223 = vcmp.eq.f32.partialorder %v222, 8.507059e+37
    %v224 = vand.u32 %v197, 2147483648
    %v225 = vor.u32 1.1754944e-38, %v224
    %v226 = vsel %vm223, %v225, %v221
    %v227 = vmul.f32 %v191, %v226
    %v228 = vmul.f32 %v193, %v211
    %v229 = vmul.f32 %v195, %v226
    %v230 = vmul.f32 %v99, %v212
    %v231 = vmul.f32 %v100, %v227
    %v232 = vmul.f32 %v101, %v228
    %v233 = vmul.f32 %v102, %v229
    %v234 = vld [vmem:[#allocation5] sm:$0xff]
    %v235 = vld [vmem:[#allocation5 + $0x8] sm:$0xff]
    %v236 = vld [vmem:[#allocation5 + $0x10] sm:$0xff]
    %v237 = vld [vmem:[#allocation5 + $0x18] sm:$0xff]
    %v238 = vld [vmem:[#allocation7] sm:$0xff]
    %v239 = vld [vmem:[#allocation7 + $0x8] sm:$0xff]
    %v240 = vld [vmem:[#allocation7 + $0x10] sm:$0xff]
    %v241 = vld [vmem:[#allocation7 + $0x18] sm:$0xff]
    %v243 = vsel %vm115, %v230, 0
    %v246 = vsel %vm115, %v231, 0
    %v249 = vsel %vm115, %v232, 0
    %v252 = vsel %vm115, %v233, 0
    %254 = vmatpush.msra.mxu0 0.0
    %255 = vmatpush.msra.mxu0 0.0
    %256 = vmatpush.msra.mxu0 0.0
    %257 = vmatpush.msra.mxu0 0.0
    %258 = vmatpush.msra.mxu0 0.0
    %259 = vmatpush.msra.mxu0 0.0
    %260 = vmatpush.msra.mxu0 0.0
    %261 = vmatpush.msra.mxu0 0.0
    %262 = vmatpush.msra.mxu0 0.0
    %263 = vmatpush.msra.mxu0 0.0
    %264 = vmatpush.msra.mxu0 0.0
    %265 = vmatpush.msra.mxu0 0.0
    %266 = vmatpush.msra.mxu0 %v241
    %267 = vmatpush.msra.mxu0 %v240
    %268 = vmatpush.msra.mxu0 %v239
    %269 = vmatpush.msra.mxu0 %v238
    %270 = vmatmul.f32.gmra.mxu0 %v243
    %v271 = vpop.f32.mrf.mxu0
    %v272 = vadd.f32 0.0, %v271
    %273 = vmatmul.f32.gmra.mxu0 %v246
    %v274 = vpop.f32.mrf.mxu0
    %v275 = vadd.f32 0.0, %v274
    %276 = vmatmul.f32.gmra.mxu0 %v249
    %v277 = vpop.f32.mrf.mxu0
    %v278 = vadd.f32 0.0, %v277
    %279 = vmatmul.f32.gmra.mxu0 %v252
    %v280 = vpop.f32.mrf.mxu0
    %v281 = vadd.f32 0.0, %v280
    %282 = vdwg.mxu0
    %v284 = vsel %vm115, %v103, 0
    %v287 = vsel %vm115, %v104, 0
    %v290 = vsel %vm115, %v105, 0
    %v293 = vsel %vm115, %v106, 0
    %295 = vmatpush.msra.mxu0 0.0
    %296 = vmatpush.msra.mxu0 0.0
    %297 = vmatpush.msra.mxu0 0.0
    %298 = vmatpush.msra.mxu0 0.0
    %299 = vmatpush.msra.mxu0 0.0
    %300 = vmatpush.msra.mxu0 0.0
    %301 = vmatpush.msra.mxu0 0.0
    %302 = vmatpush.msra.mxu0 0.0
    %303 = vmatpush.msra.mxu0 0.0
    %304 = vmatpush.msra.mxu0 0.0
    %305 = vmatpush.msra.mxu0 0.0
    %306 = vmatpush.msra.mxu0 0.0
    %307 = vmatpush.msra.mxu0 %v237
    %308 = vmatpush.msra.mxu0 %v236
    %309 = vmatpush.msra.mxu0 %v235
    %310 = vmatpush.msra.mxu0 %v234
    %311 = vmatmul.f32.gmra.mxu0 %v284
    %v312 = vpop.f32.mrf.mxu0
    %v313 = vadd.f32 %v272, %v312
    %314 = vmatmul.f32.gmra.mxu0 %v287
    %v315 = vpop.f32.mrf.mxu0
    %v316 = vadd.f32 %v275, %v315
    %317 = vmatmul.f32.gmra.mxu0 %v290
    %v318 = vpop.f32.mrf.mxu0
    %v319 = vadd.f32 %v278, %v318
    %320 = vmatmul.f32.gmra.mxu0 %v293
    %v321 = vpop.f32.mrf.mxu0
    %v322 = vadd.f32 %v281, %v321
    %323 = vdwg.mxu0
    %v324 = vmul.f32 %v107, %v212
    %v325 = vmul.f32 %v108, %v227
    %v326 = vmul.f32 %v109, %v228
    %v327 = vmul.f32 %v110, %v229
    %v328 = vld [vmem:[#allocation8] sm:$0xff]
    %v329 = vld [vmem:[#allocation8 + $0x8] sm:$0xff]
    %v330 = vld [vmem:[#allocation8 + $0x10] sm:$0xff]
    %v331 = vld [vmem:[#allocation8 + $0x18] sm:$0xff]
    %v333 = vsel %vm115, %v324, 0
    %v336 = vsel %vm115, %v325, 0
    %v339 = vsel %vm115, %v326, 0
    %v342 = vsel %vm115, %v327, 0
    %344 = vmatpush.msra.mxu0 0.0
    %345 = vmatpush.msra.mxu0 0.0
    %346 = vmatpush.msra.mxu0 0.0
    %347 = vmatpush.msra.mxu0 0.0
    %348 = vmatpush.msra.mxu0 0.0
    %349 = vmatpush.msra.mxu0 0.0
    %350 = vmatpush.msra.mxu0 0.0
    %351 = vmatpush.msra.mxu0 0.0
    %352 = vmatpush.msra.mxu0 0.0
    %353 = vmatpush.msra.mxu0 0.0
    %354 = vmatpush.msra.mxu0 0.0
    %355 = vmatpush.msra.mxu0 0.0
    %356 = vmatpush.msra.mxu0 %v331
    %357 = vmatpush.msra.mxu0 %v330
    %358 = vmatpush.msra.mxu0 %v329
    %359 = vmatpush.msra.mxu0 %v328
    %360 = vmatmul.f32.gmra.mxu0 %v333
    %v361 = vpop.f32.mrf.mxu0
    %v362 = vadd.f32 0.0, %v361
    %363 = vmatmul.f32.gmra.mxu0 %v336
    %v364 = vpop.f32.mrf.mxu0
    %v365 = vadd.f32 0.0, %v364
    %366 = vmatmul.f32.gmra.mxu0 %v339
    %v367 = vpop.f32.mrf.mxu0
    %v368 = vadd.f32 0.0, %v367
    %369 = vmatmul.f32.gmra.mxu0 %v342
    %v370 = vpop.f32.mrf.mxu0
    %v371 = vadd.f32 0.0, %v370
    %372 = vdwg.mxu0
    %v373 = vadd.f32 %v313, %v362
    %v374 = vadd.f32 %v316, %v365
    %v375 = vadd.f32 %v319, %v368
    %v376 = vadd.f32 %v322, %v371
    %v377 = vld [vmem:[%s7] sm:$0x1]
    %v379 = vperm.slane %v377, 0
    %v381 = vadd.f32 %v373, %v379
    %v382 = vadd.f32 %v374, %v379
    %v383 = vadd.f32 %v375, %v379
    %v384 = vadd.f32 %v376, %v379
    %v385 = vmax.f32 %v381, 0.0
    %v386 = vmax.f32 %v382, 0.0
    %v387 = vmax.f32 %v383, 0.0
    %v388 = vmax.f32 %v384, 0.0
    %v389 = vsel %vm115, %v385, 0.0
    %390 = vadd.xlane.f32.xlu0 %v389
    %v391 = vpop.xlane.xlu0 %390
    %v392 = vsel %vm115, %v386, 0.0
    %393 = vadd.xlane.f32.xlu0 %v392
    %v394 = vpop.xlane.xlu0 %393
    %v395 = vsel %vm115, %v387, 0.0
    %396 = vadd.xlane.f32.xlu0 %v395
    %v397 = vpop.xlane.xlu0 %396
    %v398 = vsel %vm115, %v388, 0.0
    %399 = vadd.xlane.f32.xlu0 %v398
    %v400 = vpop.xlane.xlu0 %399
    %v401 = vrcp.pop 32.0
    %v402 = vmul.f32 32.0, %v401
    %v403 = vsub.f32 1.0, %v402
    %v404 = vmul.f32 %v401, %v403
    %v405 = vadd.f32 %v401, %v404
    %vm406 = vweird.f32 %v401
    %v407 = vsel %vm406, %v401, %v405
    %v408 = vmul.f32 %v391, %v407
    %v409 = vmul.f32 %v394, %v407
    %v410 = vmul.f32 %v397, %v407
    %v411 = vmul.f32 %v400, %v407
    %v412 = vsub.f32 %v385, %v408
    %v413 = vsub.f32 %v386, %v409
    %v414 = vsub.f32 %v387, %v410
    %v415 = vsub.f32 %v388, %v411
    %v416 = vmul.f32 %v412, %v412
    %v417 = vmul.f32 %v413, %v413
    %v418 = vmul.f32 %v414, %v414
    %v419 = vmul.f32 %v415, %v415
    %v420 = vsel %vm115, %v416, 0.0
    %421 = vadd.xlane.f32.xlu0 %v420
    %v422 = vpop.xlane.xlu0 %421
    %v423 = vsel %vm115, %v417, 0.0
    %424 = vadd.xlane.f32.xlu0 %v423
    %v425 = vpop.xlane.xlu0 %424
    %v426 = vsel %vm115, %v418, 0.0
    %427 = vadd.xlane.f32.xlu0 %v426
    %v428 = vpop.xlane.xlu0 %427
    %v429 = vsel %vm115, %v419, 0.0
    %430 = vadd.xlane.f32.xlu0 %v429
    %v431 = vpop.xlane.xlu0 %430
    %v432 = vmul.f32 %v422, %v407
    %v433 = vmul.f32 %v425, %v407
    %v434 = vmul.f32 %v428, %v407
    %v435 = vmul.f32 %v431, %v407
    %v436 = vadd.f32 %v432, 1e-05
    %v437 = vadd.f32 %v433, 1e-05
    %v438 = vadd.f32 %v434, 1e-05
    %v439 = vadd.f32 %v435, 1e-05
    %v440 = vrsqrt.pop %v436
    %v441 = vmul.f32 %v440, %v436
    %v442 = vmul.f32 %v441, %v440
    %v443 = vmul.f32 0.5, %v442
    %v444 = vsub.f32 1.5, %v443
    %v445 = vmul.f32 %v440, %v444
    %vm446 = vweird.f32 %v436
    %vm447 = vweird.f32 %v440
    %vm448 = vmor %vm446, %vm447
    %v449 = vsel %vm448, %v440, %v445
    %v450 = vrsqrt.pop %v437
    %v451 = vmul.f32 %v450, %v437
    %v452 = vmul.f32 %v451, %v450
    %v453 = vmul.f32 0.5, %v452
    %v454 = vsub.f32 1.5, %v453
    %v455 = vmul.f32 %v450, %v454
    %vm456 = vweird.f32 %v437
    %vm457 = vweird.f32 %v450
    %vm458 = vmor %vm456, %vm457
    %v459 = vsel %vm458, %v450, %v455
    %v460 = vrsqrt.pop %v438
    %v461 = vmul.f32 %v460, %v438
    %v462 = vmul.f32 %v461, %v460
    %v463 = vmul.f32 0.5, %v462
    %v464 = vsub.f32 1.5, %v463
    %v465 = vmul.f32 %v460, %v464
    %vm466 = vweird.f32 %v438
    %vm467 = vweird.f32 %v460
    %vm468 = vmor %vm466, %vm467
    %v469 = vsel %vm468, %v460, %v465
    %v470 = vrsqrt.pop %v439
    %v471 = vmul.f32 %v470, %v439
    %v472 = vmul.f32 %v471, %v470
    %v473 = vmul.f32 0.5, %v472
    %v474 = vsub.f32 1.5, %v473
    %v475 = vmul.f32 %v470, %v474
    %vm476 = vweird.f32 %v439
    %vm477 = vweird.f32 %v470
    %vm478 = vmor %vm476, %vm477
    %v479 = vsel %vm478, %v470, %v475
    %v480 = vmul.f32 %v412, %v449
    %v481 = vmul.f32 %v413, %v459
    %v482 = vmul.f32 %v414, %v469
    %v483 = vmul.f32 %v415, %v479
    %v484 = vld [vmem:[%s8] sm:$0x1]
    %v486 = vperm.slane %v484, 0
    %v488 = vmul.f32 %v480, %v486
    %v489 = vmul.f32 %v481, %v486
    %v490 = vmul.f32 %v482, %v486
    %v491 = vmul.f32 %v483, %v486
    %v492 = vld [vmem:[%s9] sm:$0x1]
    %v494 = vperm.slane %v492, 0
    %v496 = vadd.f32 %v488, %v494
    %v497 = vadd.f32 %v489, %v494
    %v498 = vadd.f32 %v490, %v494
    %v499 = vadd.f32 %v491, %v494
    %500 = vst.msk [vmem:[#allocation10] sm:$0xff] %vm115, %v496
    %501 = vst.msk [vmem:[#allocation10 + $0x8] sm:$0xff] %vm115, %v497
    %502 = vst.msk [vmem:[#allocation10 + $0x10] sm:$0xff] %vm115, %v498
    %503 = vst.msk [vmem:[#allocation10 + $0x18] sm:$0xff] %vm115, %v499
    // Predicated region
    $region58: #{tpu_custom_call.1} parent=1 // pred_check
      _
    $region59: #{tpu_custom_call.1} parent=1 // pred_check_branch
      %505 = sbr.rel (0) target = $region61
    $region60: #{tpu_custom_call.1} parent=1 // pred_region
      %507 = vsyncadd [#allocation4], 0
      %s508 = sshll.u32 [#allocation10], 4
      %s509 = int_to_ptr.vmem [resolvable:$true] %s508
      %s510 = sshll.u32 %s10, 4
      %s511 = int_to_ptr.hbm [resolvable:$true] %s510
      %516 = dma.vmem_to_hbm [thread:$0]  %s509, 512, %s511, [#allocation4], 128, 128, 8
    $region61: #{tpu_custom_call.1} parent=1 // pred_fallthru
      _
    // Predicated region
    $region62: #{tpu_custom_call.1} parent=1 // pred_check
      _
    $region63: #{tpu_custom_call.1} parent=1 // pred_check_branch
      %518 = sbr.rel (0) target = $region65
    $region64: #{tpu_custom_call.1} parent=1 // pred_region
      %520 = dma.done [#allocation4], 512
    $region65: #{tpu_custom_call.1} parent=1 // pred_fallthru
      _
    %521 = vsyncpa [#allocation3], 1
    %522 = vsyncpa [#allocation6], 1
    %523 = vsyncpa [#allocation9], 1
    %524 = vsyncpa [#allocation4], 1

</llo_original>
